<compile_context>
chip_gen: v7x
topology: tpu7x:2x2x1
jax: 0.10.0
libtpu: 0.0.40
codegen_flags: <defaults>
</compile_context>

<pallas_src>
import jax
import jax.numpy as jnp
from jax.experimental import pallas as pl
from jax.experimental.pallas import tpu as pltpu


# ---------------------------------------------------------------------------
# Canonical forward: unsqueeze is a metadata-only reshape -> no kernel at all.
# ---------------------------------------------------------------------------
def my_homography_forward(homo: jax.Array) -> jax.Array:
    """Equivalent of MyHomography.forward(): homo[None, :, :] (free in XLA)."""
    assert homo.shape == (3, 3)
    return jnp.expand_dims(homo, axis=0)


# ---------------------------------------------------------------------------
# Minimal Pallas fusion stub (only if a pallas_call must exist at this point).
# Grid-less, whole-array VMEM blocks: the body is a single vld/vst pair.
# ---------------------------------------------------------------------------
def _homography_unsqueeze_kernel(homo_ref, out_ref):
    # homo_ref: (3, 3) f32 in VMEM; out_ref: (1, 3, 3) f32 in VMEM.
    # The unsqueeze(dim=0) is realized by storing into the leading singleton.
    out_ref[0, :, :] = homo_ref[...]


def my_homography_forward_pallas(homo: jax.Array) -> jax.Array:
    """Pallas stub version of forward(): returns homo[None, :, :]."""
    assert homo.shape == (3, 3)
    return pl.pallas_call(
        _homography_unsqueeze_kernel,
        out_shape=jax.ShapeDtypeStruct((1, 3, 3), homo.dtype),
        # No grid: a single kernel invocation, no pipeline bookkeeping.
        in_specs=[pl.BlockSpec(memory_space=pltpu.MemorySpace.VMEM)],
        out_specs=pl.BlockSpec(memory_space=pltpu.MemorySpace.VMEM),
        # 36 B in + 36 B out; tell the scheduler this call is negligible.
        cost_estimate=pl.CostEstimate(flops=0, transcendentals=0,
                                      bytes_accessed=72),
    )(homo)


if __name__ == "__main__":
    # forward() takes no inputs; PRNGKey(0) kept only for the deterministic
    # seed convention (unused: init.eye_ is deterministic).
    _ = jax.random.PRNGKey(0)
    homo = jnp.eye(3, dtype=jnp.float32)   # torch.nn.init.eye_ equivalent

    # Canonical (free) forward.
    out = my_homography_forward(homo)
    out = jax.block_until_ready(out)

    # Pallas fusion stub, checked against the free path.
    out_pallas = my_homography_forward_pallas(homo)
    out_pallas = jax.block_until_ready(out_pallas)

    ref = jnp.expand_dims(homo, axis=0)
    assert out.shape == (1, 3, 3), out.shape
    assert out_pallas.shape == (1, 3, 3), out_pallas.shape
    assert out.dtype == jnp.float32 and out_pallas.dtype == jnp.float32
    assert bool(jnp.allclose(out, ref)), "mismatch: expand_dims path"
    assert bool(jnp.allclose(out_pallas, ref)), "mismatch: pallas path"

    print("KERNEL_OK")
</pallas_src>

<mosaic_0001>
module attributes {stable_mosaic.version = 11 : i64} {
  func.func @_homography_unsqueeze_kernel(%arg0: memref<3x3xf32, #tpu.memory_space<vmem>>, %arg1: memref<1x3x3xf32, #tpu.memory_space<vmem>>) attributes {dimension_semantics = [], scalar_prefetch = 0 : i64, scratch_operands = 0 : i64, tpu.core_type = #tpu.core_type<tc>} {
    %c0 = arith.constant 0 : index
    %c0_0 = arith.constant 0 : index
    %0 = vector.load %arg0[%c0, %c0_0] : memref<3x3xf32, #tpu.memory_space<vmem>>, vector<3x3xf32>
    %c0_1 = arith.constant 0 : index
    %c0_2 = arith.constant 0 : index
    %c0_3 = arith.constant 0 : index
    %1 = vector.load %arg1[%c0_1, %c0_2, %c0_3] : memref<1x3x3xf32, #tpu.memory_space<vmem>>, vector<1x3x3xf32>
    %2 = vector.shape_cast %1 : vector<1x3x3xf32> to vector<3x3xf32>
    %3 = vector.shape_cast %0 : vector<3x3xf32> to vector<1x3x3xf32>
    tpu.vector_store %arg1[%c0_1, %c0_2, %c0_3], %3 {strides = array<i32>} : memref<1x3x3xf32, #tpu.memory_space<vmem>>, vector<1x3x3xf32>,
    return
  }
}

</mosaic_0001>

<llo_original>
// kernel: tpu_custom_call.1
$region0: #{tpu_custom_call.1}
  #allocation0 [shape = 'u32[]', space=smem, size = 0x4, offset = 0x4, fixed_abs, tag = 'smem constant byte address 0x4 - core index']
  #allocation1 [shape = 'u32[144,128]{1,0:T(1,128)}', space=vmem, size = 0x12000, scoped, tag = 'internal scratch']
  %s0 = inlined_call_operand.hbm [shape: f32[3,3], index: 0, kind: input, shape index: {}]
  %s1 = inlined_call_operand.vmem [shape: f32[1,3,3], index: 1, kind: output, shape index: {}]
  %s2 = sld [smem:[#allocation0]]
  $region18: #{tpu_custom_call.1} parent=0
    _
  %s4 = ssub.s32 1, %s2
  %s5 = scalar_select 0, %s4, %s2
  $region1: #{tpu_custom_call.1} parent=0
    #allocation2 [shape = 'u8[2048]{0}', space=vmem, size = 0x800, scoped, tag = 'input window, operand 0, single buffered']
    #allocation3 [shape = 's32[1]{0}', space=sflag, size = 0x4, scoped, tag = 'scoped memory for tpu_custom_call.1']
    %6 = vsyncpa [#allocation3], 0
    // Predicated region
    $region2: #{tpu_custom_call.1} parent=1 // pred_check
      _
    $region3: #{tpu_custom_call.1} parent=1 // pred_check_branch
      %8 = sbr.rel (0) target = $region5
    $region4: #{tpu_custom_call.1} parent=1 // pred_region
      %s10 = ssub.s32 64, 64
      %11 = vsyncadd [#allocation3], %s10
      %s13 = sshll.u32 [#allocation2], 4
      %s14 = int_to_ptr.vmem [resolvable:$true] %s13
      %16 = dma.hbm_to_vmem [thread:$0]  %s0, 64, %s14, [#allocation3]
    $region5: #{tpu_custom_call.1} parent=1 // pred_fallthru
      _
    // Predicated region
    $region6: #{tpu_custom_call.1} parent=1 // pred_check
      _
    $region7: #{tpu_custom_call.1} parent=1 // pred_check_branch
      %18 = sbr.rel (0) target = $region9
    $region8: #{tpu_custom_call.1} parent=1 // pred_region
      %19 = dma.done [#allocation3], 64
    $region9: #{tpu_custom_call.1} parent=1 // pred_fallthru
      _
    %v20 = vld [vmem:[#allocation2] sm:$0x7]
    %vm21 = vcmask 18432
    %22 = vst.msk [vmem:[%s1] sm:$0x7] %vm21, %v20
    // Predicated region
    $region10: #{tpu_custom_call.1} parent=1 // pred_check
      _
    $region11: #{tpu_custom_call.1} parent=1 // pred_check_branch
      %24 = sbr.rel (0) target = $region13
    $region12: #{tpu_custom_call.1} parent=1 // pred_region
      _
    $region13: #{tpu_custom_call.1} parent=1 // pred_fallthru
      _
    // Predicated region
    $region14: #{tpu_custom_call.1} parent=1 // pred_check
      _
    $region15: #{tpu_custom_call.1} parent=1 // pred_check_branch
      %26 = sbr.rel (0) target = $region17
    $region16: #{tpu_custom_call.1} parent=1 // pred_region
      _
    $region17: #{tpu_custom_call.1} parent=1 // pred_fallthru
      _
    %27 = vsyncpa [#allocation3], 1

</llo_original>
